<compile_context>
chip_gen: v6e
topology: v6e:2x2x1
jax: 0.10.0
libtpu: 0.0.40
codegen_flags: <defaults>
</compile_context>

<pallas_src>
import functools

import jax
import jax.numpy as jnp
from jax.experimental import pallas as pl
from jax.experimental.pallas import tpu as pltpu


def _agg_kernel(others_ref, x_ref, w_ref, o_ref, *, n_others, inv_scale):
    """One grid step = one output view i.

    others_ref : SMEM int32 (nviews * n_others,), flat table of "other" view
                 indices (scalar-prefetched).
    x_ref      : VMEM (nviews, M, HW) float32 — all views, fully resident.
    w_ref      : VMEM (n_others, HW, HW) bfloat16 — the 3 FC weights of view i.
    o_ref      : VMEM (M, HW) float32 — output for view i.
    """
    i = pl.program_id(0)
    acc = jnp.zeros(o_ref.shape, jnp.float32)
    for k in range(n_others):                      # static unroll (n_others=3)
        j = others_ref[i * n_others + k]           # dynamic leading-axis index
        xk = x_ref[j].astype(w_ref.dtype)          # (M, HW) bf16 for the MXU
        acc += jnp.dot(xk, w_ref[k], preferred_element_type=jnp.float32)
    o_ref[...] = (acc * inv_scale).astype(o_ref.dtype)


def aggregation_forward(inputs, fc_weights):
    """Pallas implementation of Aggregation.forward.

    inputs     : list of nviews arrays, each (N, C, H, W) float32.
    fc_weights : (NUM_NETS, H*W, H*W) float32, NUM_NETS = nviews*(nviews-1),
                 ordered exactly like the PyTorch ModuleList (outer loop i,
                 inner loop over others j).
    Returns    : list of nviews arrays, each (N, C, H, W) float32.
    """
    nviews = len(inputs)
    n_others = nviews - 1
    N, C, H, W = inputs[0].shape
    M, HW = N * C, H * W

    # Glue (plain JAX, no gather/duplication): stack flattened views and
    # group the FC weights per output view. Weights go to bf16 for DMA/MXU.
    x = jnp.stack([v.reshape(M, HW) for v in inputs])             # (nviews, M, HW) f32
    w = fc_weights.reshape(nviews, n_others, HW, HW).astype(jnp.bfloat16)

    # Flat "other view" index table, scalar-prefetched into SMEM.
    others = jnp.asarray(
        [j for i in range(nviews) for j in range(nviews) if j != i],
        dtype=jnp.int32,
    )                                                             # (nviews*n_others,)

    out = pl.pallas_call(
        functools.partial(
            _agg_kernel, n_others=n_others, inv_scale=1.0 / n_others
        ),
        out_shape=jax.ShapeDtypeStruct((nviews, M, HW), inputs[0].dtype),
        grid_spec=pltpu.PrefetchScalarGridSpec(
            num_scalar_prefetch=1,
            grid=(nviews,),
            in_specs=[
                # all views' activations, resident every step (32 KiB total)
                pl.BlockSpec((nviews, M, HW), lambda i, others: (0, 0, 0)),
                # the n_others FC weights belonging to output view i
                pl.BlockSpec(
                    (None, n_others, HW, HW), lambda i, others: (i, 0, 0, 0)
                ),
            ],
            # lane-dense output tile (last dim = HW = 256)
            out_specs=pl.BlockSpec((None, M, HW), lambda i, others: (i, 0, 0)),
        ),
        compiler_params=pltpu.CompilerParams(
            dimension_semantics=("parallel",)
        ),
    )(others, x, w)

    return [out[i].reshape(N, C, H, W) for i in range(nviews)]


def aggregation_reference(inputs, fc_weights):
    """Pure-JAX f32 reference mirroring the PyTorch forward loop exactly."""
    nviews = len(inputs)
    N, C, H, W = inputs[0].shape
    outs = []
    fc_idx = 0
    for i in range(nviews):
        warped = jnp.zeros_like(inputs[0])
        for j in range(nviews):
            if j == i:
                continue
            xr = inputs[j].reshape(N * C, H * W)
            fc_out = (xr @ fc_weights[fc_idx]).reshape(N, C, H, W)
            warped = warped + fc_out / (nviews - 1)
            fc_idx += 1
        outs.append(warped)
    return outs


if __name__ == "__main__":
    # Small shapes consistent with the module:
    #   heatmap size = 16  ->  ChannelWiseFC weight is (256, 256)
    #   nviews = 4, NUM_NETS = 12, batch N = 2, joints/channels C = 4
    SIZE = 16
    NVIEWS = 4
    NUM_NETS = NVIEWS * (NVIEWS - 1)  # 12
    N, C, H, W = 2, 4, SIZE, SIZE

    key = jax.random.PRNGKey(0)
    k_w, *k_x = jax.random.split(key, 1 + NVIEWS)

    # __init__: weight.data.uniform_(0, 0.1), shape (size*size, size*size) per net
    fc_weights = jax.random.uniform(
        k_w, (NUM_NETS, H * W, H * W), dtype=jnp.float32, minval=0.0, maxval=0.1
    )
    inputs = [
        jax.random.normal(k_x[i], (N, C, H, W), dtype=jnp.float32)
        for i in range(NVIEWS)
    ]

    outs = aggregation_forward(inputs, fc_weights)
    outs = [jax.block_until_ready(o) for o in outs]

    refs = aggregation_reference(inputs, fc_weights)
    # Weights are fed to the MXU in bf16 (f32 accumulation), so tolerance is
    # looser than a pure-f32 comparison.
    for o, r in zip(outs, refs):
        assert o.shape == (N, C, H, W)
        assert jnp.allclose(o, r, rtol=2e-2, atol=2e-2), "mismatch vs reference"

    print("KERNEL_OK")
</pallas_src>

<mosaic_0001>
module attributes {stable_mosaic.version = 11 : i64} {
  func.func @_agg_kernel(%arg0: i32, %arg1: memref<12xi32, #tpu.memory_space<smem>>, %arg2: memref<4x8x256xf32, #tpu.memory_space<vmem>>, %arg3: memref<1x3x256x256xbf16, #tpu.memory_space<vmem>>, %arg4: memref<1x8x256xf32, #tpu.memory_space<vmem>>) attributes {dimension_semantics = [#tpu.dimension_semantics<parallel>], iteration_bounds = array<i64: 4>, scalar_prefetch = 1 : i64, scratch_operands = 0 : i64, tpu.core_type = #tpu.core_type<tc>, window_params = [{pipeline_mode = #tpu.pipeline_mode<synchronous>, transform_indices = @transform_0, window_bounds = array<i64: 4, 8, 256>}, {transform_indices = @transform_1, window_bounds = array<i64: 1, 3, 256, 256>}, {transform_indices = @transform_2, window_bounds = array<i64: 1, 8, 256>}]} {
    %cst = arith.constant 0.000000e+00 : f32
    %0 = vector.broadcast %cst : f32 to vector<8x256xf32>
    %c3_i32 = arith.constant 3 : i32
    %1 = arith.muli %arg0, %c3_i32 : i32
    %c0_i32 = arith.constant 0 : i32
    %2 = arith.addi %1, %c0_i32 : i32
    %3 = arith.index_cast %2 : i32 to index
    %4 = memref.load %arg1[%3] : memref<12xi32, #tpu.memory_space<smem>>
    %5 = arith.index_cast %4 : i32 to index
    %c0 = arith.constant 0 : index
    %c0_0 = arith.constant 0 : index
    %6 = vector.load %arg2[%5, %c0, %c0_0] : memref<4x8x256xf32, #tpu.memory_space<vmem>>, vector<1x8x256xf32>
    %7 = vector.shape_cast %6 : vector<1x8x256xf32> to vector<8x256xf32>
    %8 = arith.truncf %7 : vector<8x256xf32> to vector<8x256xbf16>
    %c0_1 = arith.constant 0 : index
    %c0_2 = arith.constant 0 : index
    %c0_3 = arith.constant 0 : index
    %c0_4 = arith.constant 0 : index
    %9 = vector.load %arg3[%c0_1, %c0_2, %c0_3, %c0_4] : memref<1x3x256x256xbf16, #tpu.memory_space<vmem>>, vector<1x1x256x256xbf16>
    %10 = vector.shape_cast %9 : vector<1x1x256x256xbf16> to vector<256x256xbf16>
    %cst_5 = arith.constant dense<0.000000e+00> : vector<8x256xf32>
    %11 = tpu.matmul %8, %10, %cst_5 {dimension_numbers = #tpu.dot_dimension_numbers<[1], [0], [0], [1], [0, 0, 1, 1], [], []>} : vector<8x256xbf16>, vector<256x256xbf16>, vector<8x256xf32> -> vector<8x256xf32>
    %12 = arith.addf %0, %11 : vector<8x256xf32>
    %c3_i32_6 = arith.constant 3 : i32
    %13 = arith.muli %arg0, %c3_i32_6 : i32
    %c1_i32 = arith.constant 1 : i32
    %14 = arith.addi %13, %c1_i32 : i32
    %15 = arith.index_cast %14 : i32 to index
    %16 = memref.load %arg1[%15] : memref<12xi32, #tpu.memory_space<smem>>
    %17 = arith.index_cast %16 : i32 to index
    %c0_7 = arith.constant 0 : index
    %c0_8 = arith.constant 0 : index
    %18 = vector.load %arg2[%17, %c0_7, %c0_8] : memref<4x8x256xf32, #tpu.memory_space<vmem>>, vector<1x8x256xf32>
    %19 = vector.shape_cast %18 : vector<1x8x256xf32> to vector<8x256xf32>
    %20 = arith.truncf %19 : vector<8x256xf32> to vector<8x256xbf16>
    %c0_9 = arith.constant 0 : index
    %c1 = arith.constant 1 : index
    %c0_10 = arith.constant 0 : index
    %c0_11 = arith.constant 0 : index
    %21 = vector.load %arg3[%c0_9, %c1, %c0_10, %c0_11] : memref<1x3x256x256xbf16, #tpu.memory_space<vmem>>, vector<1x1x256x256xbf16>
    %22 = vector.shape_cast %21 : vector<1x1x256x256xbf16> to vector<256x256xbf16>
    %cst_12 = arith.constant dense<0.000000e+00> : vector<8x256xf32>
    %23 = tpu.matmul %20, %22, %cst_12 {dimension_numbers = #tpu.dot_dimension_numbers<[1], [0], [0], [1], [0, 0, 1, 1], [], []>} : vector<8x256xbf16>, vector<256x256xbf16>, vector<8x256xf32> -> vector<8x256xf32>
    %24 = arith.addf %12, %23 : vector<8x256xf32>
    %c3_i32_13 = arith.constant 3 : i32
    %25 = arith.muli %arg0, %c3_i32_13 : i32
    %c2_i32 = arith.constant 2 : i32
    %26 = arith.addi %25, %c2_i32 : i32
    %27 = arith.index_cast %26 : i32 to index
    %28 = memref.load %arg1[%27] : memref<12xi32, #tpu.memory_space<smem>>
    %29 = arith.index_cast %28 : i32 to index
    %c0_14 = arith.constant 0 : index
    %c0_15 = arith.constant 0 : index
    %30 = vector.load %arg2[%29, %c0_14, %c0_15] : memref<4x8x256xf32, #tpu.memory_space<vmem>>, vector<1x8x256xf32>
    %31 = vector.shape_cast %30 : vector<1x8x256xf32> to vector<8x256xf32>
    %32 = arith.truncf %31 : vector<8x256xf32> to vector<8x256xbf16>
    %c0_16 = arith.constant 0 : index
    %c2 = arith.constant 2 : index
    %c0_17 = arith.constant 0 : index
    %c0_18 = arith.constant 0 : index
    %33 = vector.load %arg3[%c0_16, %c2, %c0_17, %c0_18] : memref<1x3x256x256xbf16, #tpu.memory_space<vmem>>, vector<1x1x256x256xbf16>
    %34 = vector.shape_cast %33 : vector<1x1x256x256xbf16> to vector<256x256xbf16>
    %cst_19 = arith.constant dense<0.000000e+00> : vector<8x256xf32>
    %35 = tpu.matmul %32, %34, %cst_19 {dimension_numbers = #tpu.dot_dimension_numbers<[1], [0], [0], [1], [0, 0, 1, 1], [], []>} : vector<8x256xbf16>, vector<256x256xbf16>, vector<8x256xf32> -> vector<8x256xf32>
    %36 = arith.addf %24, %35 : vector<8x256xf32>
    %cst_20 = arith.constant 0.333333343 : f32
    %37 = vector.broadcast %cst_20 : f32 to vector<8x256xf32>
    %38 = arith.mulf %36, %37 : vector<8x256xf32>
    %c0_21 = arith.constant 0 : index
    %c0_22 = arith.constant 0 : index
    %c0_23 = arith.constant 0 : index
    %39 = vector.load %arg4[%c0_21, %c0_22, %c0_23] : memref<1x8x256xf32, #tpu.memory_space<vmem>>, vector<1x8x256xf32>
    %40 = vector.shape_cast %39 : vector<1x8x256xf32> to vector<8x256xf32>
    %41 = vector.shape_cast %38 : vector<8x256xf32> to vector<1x8x256xf32>
    tpu.vector_store %arg4[%c0_21, %c0_22, %c0_23], %41 {strides = array<i32>} : memref<1x8x256xf32, #tpu.memory_space<vmem>>, vector<1x8x256xf32>,
    return
  }
  func.func @transform_0(%arg0: i32, %arg1: memref<12xi32, #tpu.memory_space<smem>>) -> (i32, i32, i32) {
    %c0_i32 = arith.constant 0 : i32
    %c0_i32_0 = arith.constant 0 : i32
    %c0_i32_1 = arith.constant 0 : i32
    %c0_i32_2 = arith.constant 0 : i32
    return %c0_i32, %c0_i32_0, %c0_i32_1 : i32, i32, i32
  }
  func.func @transform_1(%arg0: i32, %arg1: memref<12xi32, #tpu.memory_space<smem>>) -> (i32, i32, i32, i32) {
    %c0_i32 = arith.constant 0 : i32
    %c0_i32_0 = arith.constant 0 : i32
    %c0_i32_1 = arith.constant 0 : i32
    %c0_i32_2 = arith.constant 0 : i32
    return %arg0, %c0_i32, %c0_i32_0, %c0_i32_1 : i32, i32, i32, i32
  }
  func.func @transform_2(%arg0: i32, %arg1: memref<12xi32, #tpu.memory_space<smem>>) -> (i32, i32, i32) {
    %c0_i32 = arith.constant 0 : i32
    %c0_i32_0 = arith.constant 0 : i32
    %c0_i32_1 = arith.constant 0 : i32
    return %arg0, %c0_i32, %c0_i32_0 : i32, i32, i32
  }
}

</mosaic_0001>

<llo_original>
// kernel: tpu_custom_call.1
$region0: #{tpu_custom_call.1}
  #allocation0 [shape = 'u32[]', space=smem, size = 0x4, offset = 0x4, fixed_abs, tag = 'smem constant byte address 0x4 - core index']
  #allocation1 [shape = 'u32[144,128]{1,0:T(1,128)}', space=vmem, size = 0x12000, scoped, tag = 'internal scratch']
  #allocation2 [shape = 's32[1]{0}', space=sflag, size = 0x4, scoped, tag = 'scoped memory for tpu_custom_call.1']
  #allocation3 [shape = 'u8[512]{0}', space=smem, size = 0x200, scoped, tag = 'prefetched SMEM operand 0']
  %s0 = inlined_call_operand.hbm [shape: s32[12], index: 0, kind: input, shape index: {}]
  %s1 = inlined_call_operand.hbm [shape: f32[4,8,256], index: 1, kind: input, shape index: {}]
  %s2 = inlined_call_operand.hbm [shape: bf16[4,3,256,256], index: 2, kind: input, shape index: {}]
  %s3 = inlined_call_operand.hbm [shape: f32[4,8,256], index: 3, kind: output, shape index: {}]
  %s4 = sld [smem:[#allocation0]]
  $region49: #{tpu_custom_call.1} parent=0
    _
  %s6 = ssub.s32 1, %s4
  %s7 = scalar_select 0, %s6, %s4
  %9 = dma.hbm_to_smem %s0, 16, [#allocation3], [#allocation2]
  %10 = dma.done [#allocation2], 16
  %11 = sfence
  $region1: #{tpu_custom_call.1} parent=0
    #allocation4 [shape = 'u8[32768]{0}', space=vmem, size = 0x8000, scoped, tag = 'input window, operand 1, single buffered']
    #allocation5 [shape = 's32[2]{0}', space=sflag, size = 0x8, scoped, tag = 'scoped memory for tpu_custom_call.1']
    #allocation6 [shape = 's32[2]{0}', space=sflag, size = 0x8, scoped, tag = 'scoped memory for tpu_custom_call.1']
    #allocation7 [shape = 'u8[786432]{0}', space=vmem, size = 0xc0000, scoped, tag = 'input window, operand 2']
    #allocation8 [shape = 's32[2]{0}', space=sflag, size = 0x8, scoped, tag = 'scoped memory for tpu_custom_call.1']
    #allocation9 [shape = 'u8[16384]{0}', space=vmem, size = 0x4000, scoped, tag = 'output window, operand 0']
    %12 = vsyncpa [#allocation5], 0
    %13 = vsyncpa [#allocation8], 0
    %s14 = scalar_lea.sflag [#allocation8], 1
    %15 = vsyncpa %s14, 0
    %16 = vsyncpa [#allocation6], 0
    %s17 = scalar_lea.sflag [#allocation6], 1
    %18 = vsyncpa %s17, 0
    loop: start=0, step=1, limit=6
    $region2: #{tpu_custom_call.1} parent=1 // loop_pre_header
      _
    $region3: #{tpu_custom_call.1} parent=1 // loop_header
      %s20 = sphi 0, %s24
      %p21 = scmp.ge.s32.totalorder %s20, 6
      %s28 = sphi 0, %s28
      %s30 = sphi 0, %s28
      %s31 = sphi 0, %s30
      %s45 = sphi 0, %s31
      %s51 = sphi 0, %s53
      %s54 = sphi 0, %s51
      %s55 = sphi 0, %s54
      %s71 = sphi 0, %s55
      %s77 = sphi 0, %s79
      %s80 = sphi 0, %s77
      %s81 = sphi 0, %s80
      %s97 = sphi 0, %s81
    $region4: #{tpu_custom_call.1} parent=1 // loop_header_branch
      %23 = sbr.rel (%p21) target = $region8
    $region5: #{tpu_custom_call.1} parent=1 // loop_body
      %s25 = ssub.s32 %s20, 1
      %s26 = ssub.s32 %s20, 2
      %s27 = sadd.s32 %s20, 1
      %s29 = sadd.s32 %s28, 1
      %p32 = scmp.eq.s32.totalorder %s20, 3
      %p33 = scmp.ne.s32.totalorder %s28, %s30
      %p34 = scmp.eq.s32.totalorder %s20, 0
      %p35 = por %p33, %p34
      %p36 = scmp.ne.s32.totalorder %s28, %s30
      %p37 = scmp.eq.s32.totalorder %s25, 3
      %p38 = por %p36, %p37
      %p39 = scmp.ne.s32.totalorder %s30, %s31
      %p40 = scmp.eq.s32.totalorder %s25, 0
      %p41 = por %p39, %p40
      %p42 = scmp.ne.s32.totalorder %s30, %s31
      %p43 = scmp.eq.s32.totalorder %s26, 3
      %p44 = por %p42, %p43
      %p46 = scmp.ne.s32.totalorder %s31, %s45
      %p47 = scmp.eq.s32.totalorder %s26, 0
      %p48 = por %p46, %p47
      %s49 = ssub.s32 %s20, %s27
      %p50 = scmp.eq.s32.totalorder %s49, 0
      %s52 = sadd.s32 %s51, 1
      %s53 = scalar_select %p50, %s51, %s52
      %p56 = pneg %p50
      %p57 = scmp.eq.s32.totalorder %s20, 3
      %p58 = por %p56, %p57
      %p59 = scmp.ne.s32.totalorder %s51, %s54
      %p60 = scmp.eq.s32.totalorder %s20, 0
      %p61 = por %p59, %p60
      %p62 = scmp.ne.s32.totalorder %s51, %s54
      %p63 = scmp.eq.s32.totalorder %s25, 3
      %p64 = por %p62, %p63
      %p65 = scmp.ne.s32.totalorder %s54, %s55
      %p66 = scmp.eq.s32.totalorder %s25, 0
      %p67 = por %p65, %p66
      %p68 = scmp.ne.s32.totalorder %s54, %s55
      %p69 = scmp.eq.s32.totalorder %s26, 3
      %p70 = por %p68, %p69
      %p72 = scmp.ne.s32.totalorder %s55, %s71
      %p73 = scmp.eq.s32.totalorder %s26, 0
      %p74 = por %p72, %p73
      %s75 = ssub.s32 %s20, %s27
      %p76 = scmp.eq.s32.totalorder %s75, 0
      %s78 = sadd.s32 %s77, 1
      %s79 = scalar_select %p76, %s77, %s78
      %p82 = pneg %p76
      %p83 = scmp.eq.s32.totalorder %s20, 3
      %p84 = por %p82, %p83
      %p85 = scmp.ne.s32.totalorder %s77, %s80
      %p86 = scmp.eq.s32.totalorder %s20, 0
      %p87 = por %p85, %p86
      %p88 = scmp.ne.s32.totalorder %s77, %s80
      %p89 = scmp.eq.s32.totalorder %s25, 3
      %p90 = por %p88, %p89
      %p91 = scmp.ne.s32.totalorder %s80, %s81
      %p92 = scmp.eq.s32.totalorder %s25, 0
      %p93 = por %p91, %p92
      %p94 = scmp.ne.s32.totalorder %s80, %s81
      %p95 = scmp.eq.s32.totalorder %s26, 3
      %p96 = por %p94, %p95
      %p98 = scmp.ne.s32.totalorder %s81, %s97
      %p99 = scmp.eq.s32.totalorder %s26, 0
      %p100 = por %p98, %p99
      %p101 = scmp.le.s32.totalorder 1, %s20
      %p102 = scmp.lt.s32.totalorder %s20, 5
      %p103 = pnand %p101, %p102
      %p104 = pneg %p103
      // Predicated region
      $region9: #{tpu_custom_call.1} parent=5 // pred_check
        _
      $region10: #{tpu_custom_call.1} parent=5 // pred_check_branch
        %106 = sbr.rel (%p103) target = $region12
      $region11: #{tpu_custom_call.1} parent=5 // pred_region
        %s107 = ssub.s32 %s20, 1
        // Predicated region
        $region13: #{tpu_custom_call.1} parent=11 // pred_check
          %p108 = pneg %p41
        $region14: #{tpu_custom_call.1} parent=11 // pred_check_branch
          %110 = sbr.rel (%p108) target = $region16
        $region15: #{tpu_custom_call.1} parent=11 // pred_region
          %s112 = ssub.s32 1024, 1024
          %113 = vsyncadd [#allocation5], %s112
          %s114 = sshll.u32 [#allocation4], 4
          %s115 = int_to_ptr.vmem [resolvable:$true] %s114
          %120 = dma.hbm_to_vmem [thread:$0]  %s1, 1024, %s115, [#allocation5], 256, 256, 16
        $region16: #{tpu_custom_call.1} parent=11 // pred_fallthru
          _
      $region12: #{tpu_custom_call.1} parent=5 // pred_fallthru
        _
      %p121 = scmp.lt.s32.totalorder %s20, 4
      // Predicated region
      $region17: #{tpu_custom_call.1} parent=5 // pred_check
        %p122 = pneg %p121
      $region18: #{tpu_custom_call.1} parent=5 // pred_check_branch
        %124 = sbr.rel (%p122) target = $region20
      $region19: #{tpu_custom_call.1} parent=5 // pred_region
        // Predicated region
        $region21: #{tpu_custom_call.1} parent=19 // pred_check
          %p125 = pneg %p61
        $region22: #{tpu_custom_call.1} parent=19 // pred_check_branch
          %127 = sbr.rel (%p125) target = $region24
        $region23: #{tpu_custom_call.1} parent=19 // pred_region
          %s128 = sand.u32 %s51, 1
          %s129 = scalar_lea.sflag [#allocation8], %s128
          %s130 = sand.u32 %s51, 1
          %s131 = smul.addr %s130, 768
          %s132 = scalar_lea.vmem [#allocation7], %s131
          %s134 = ssub.s32 12288, 12288
          %135 = vsyncadd %s129, %s134
          %s136 = smul.addr %s20, 192
          %s137 = smul.addr %s136, 64
          %s138 = scalar_lea.hbm %s2, %s137
          %s139 = sshll.u32 %s132, 4
          %s140 = int_to_ptr.vmem [resolvable:$true] %s139
          %145 = dma.hbm_to_vmem [thread:$0]  %s138, 12288, %s140, %s129, 128, 128, 8
        $region24: #{tpu_custom_call.1} parent=19 // pred_fallthru
          _
      $region20: #{tpu_custom_call.1} parent=5 // pred_fallthru
        _
      %p146 = scmp.le.s32.totalorder 1, %s20
      %p147 = scmp.lt.s32.totalorder %s20, 5
      %p148 = pnand %p146, %p147
      %p149 = pneg %p148
      // Predicated region
      $region25: #{tpu_custom_call.1} parent=5 // pred_check
        _
      $region26: #{tpu_custom_call.1} parent=5 // pred_check_branch
        %151 = sbr.rel (%p148) target = $region28
      $region27: #{tpu_custom_call.1} parent=5 // pred_region
        %s152 = ssub.s32 %s20, 1
        // Predicated region
        $region29: #{tpu_custom_call.1} parent=27 // pred_check
          %p153 = pneg %p41
        $region30: #{tpu_custom_call.1} parent=27 // pred_check_branch
          %155 = sbr.rel (%p153) target = $region32
        $region31: #{tpu_custom_call.1} parent=27 // pred_region
          %156 = dma.done [#allocation5], 1024
        $region32: #{tpu_custom_call.1} parent=27 // pred_fallthru
          _
        %s157 = sand.u32 %s54, 1
        %s158 = scalar_lea.sflag [#allocation8], %s157
        %s159 = sand.u32 %s54, 1
        %s160 = smul.addr %s159, 768
        %s161 = scalar_lea.vmem [#allocation7], %s160
        // Predicated region
        $region33: #{tpu_custom_call.1} parent=27 // pred_check
          %p162 = pneg %p67
        $region34: #{tpu_custom_call.1} parent=27 // pred_check_branch
          %164 = sbr.rel (%p162) target = $region36
        $region35: #{tpu_custom_call.1} parent=27 // pred_region
          %165 = dma.done %s158, 12288
        $region36: #{tpu_custom_call.1} parent=27 // pred_fallthru
          _
        %p166 = pneg %p41
        %p167 = pneg %p38
        %s168 = sand.u32 %s54, 1
        %s169 = scalar_lea.sflag [#allocation8], %s168
        %s170 = sand.u32 %s54, 1
        %s171 = smul.addr %s170, 768
        %s172 = scalar_lea.vmem [#allocation7], %s171
        %p173 = pneg %p67
        %p174 = pneg %p64
        %p175 = pneg %p93
        %p176 = pneg %p90
        %s177 = sand.u32 %s80, 1
        %s178 = scalar_lea.sflag [#allocation6], %s177
        %s179 = sand.u32 %s80, 1
        %s180 = smul.addr %s179, 16
        %s181 = scalar_lea.vmem [#allocation9], %s180
        %s182 = smul.u32 %s25, 3
        %s183 = sld [smem:[#allocation3 + %s182]]
        %s184 = smul.u32 %s183, 2
        %s185 = smul.addr %s184, 8
        %s186 = scalar_lea.vmem [#allocation4], %s185
        %v187 = vld [vmem:[%s186] sm:$0xff]
        %v188 = vld [vmem:[%s186 + $0x8] sm:$0xff]
        %v189 = vpack.c.bf16 %v187, %v187
        %v190 = vpack.c.bf16 %v188, %v188
        %v191 = vld [vmem:[%s161] sm:$0xff]
        %v192 = vld [vmem:[%s161 + $0x8] sm:$0xff]
        %v193 = vld [vmem:[%s161 + $0x10] sm:$0xff]
        %v194 = vld [vmem:[%s161 + $0x18] sm:$0xff]
        %v195 = vld [vmem:[%s161 + $0x20] sm:$0xff]
        %v196 = vld [vmem:[%s161 + $0x28] sm:$0xff]
        %v197 = vld [vmem:[%s161 + $0x30] sm:$0xff]
        %v198 = vld [vmem:[%s161 + $0x38] sm:$0xff]
        %v199 = vld [vmem:[%s161 + $0x40] sm:$0xff]
        %v200 = vld [vmem:[%s161 + $0x48] sm:$0xff]
        %v201 = vld [vmem:[%s161 + $0x50] sm:$0xff]
        %v202 = vld [vmem:[%s161 + $0x58] sm:$0xff]
        %v203 = vld [vmem:[%s161 + $0x60] sm:$0xff]
        %v204 = vld [vmem:[%s161 + $0x68] sm:$0xff]
        %v205 = vld [vmem:[%s161 + $0x70] sm:$0xff]
        %v206 = vld [vmem:[%s161 + $0x78] sm:$0xff]
        %v207 = vld [vmem:[%s161 + $0x80] sm:$0xff]
        %v208 = vld [vmem:[%s161 + $0x88] sm:$0xff]
        %v209 = vld [vmem:[%s161 + $0x90] sm:$0xff]
        %v210 = vld [vmem:[%s161 + $0x98] sm:$0xff]
        %v211 = vld [vmem:[%s161 + $0xa0] sm:$0xff]
        %v212 = vld [vmem:[%s161 + $0xa8] sm:$0xff]
        %v213 = vld [vmem:[%s161 + $0xb0] sm:$0xff]
        %v214 = vld [vmem:[%s161 + $0xb8] sm:$0xff]
        %v215 = vld [vmem:[%s161 + $0xc0] sm:$0xff]
        %v216 = vld [vmem:[%s161 + $0xc8] sm:$0xff]
        %v217 = vld [vmem:[%s161 + $0xd0] sm:$0xff]
        %v218 = vld [vmem:[%s161 + $0xd8] sm:$0xff]
        %v219 = vld [vmem:[%s161 + $0xe0] sm:$0xff]
        %v220 = vld [vmem:[%s161 + $0xe8] sm:$0xff]
        %v221 = vld [vmem:[%s161 + $0xf0] sm:$0xff]
        %v222 = vld [vmem:[%s161 + $0xf8] sm:$0xff]
        %s223 = sadd.s32 %s182, 1
        %s224 = sld [smem:[#allocation3 + %s223]]
        %s225 = smul.u32 %s224, 2
        %s226 = smul.addr %s225, 8
        %s227 = scalar_lea.vmem [#allocation4], %s226
        %v228 = vld [vmem:[%s227] sm:$0xff]
        %v229 = vld [vmem:[%s227 + $0x8] sm:$0xff]
        %v230 = vpack.c.bf16 %v228, %v228
        %v231 = vpack.c.bf16 %v229, %v229
        %s232 = scalar_lea.vmem %s161, 256 [#allocation7]
        %v233 = vld [vmem:[%s232] sm:$0xff]
        %v234 = vld [vmem:[%s232 + $0x8] sm:$0xff]
        %v235 = vld [vmem:[%s232 + $0x10] sm:$0xff]
        %v236 = vld [vmem:[%s232 + $0x18] sm:$0xff]
        %v237 = vld [vmem:[%s232 + $0x20] sm:$0xff]
        %v238 = vld [vmem:[%s232 + $0x28] sm:$0xff]
        %v239 = vld [vmem:[%s232 + $0x30] sm:$0xff]
        %v240 = vld [vmem:[%s232 + $0x38] sm:$0xff]
        %v241 = vld [vmem:[%s232 + $0x40] sm:$0xff]
        %v242 = vld [vmem:[%s232 + $0x48] sm:$0xff]
        %v243 = vld [vmem:[%s232 + $0x50] sm:$0xff]
        %v244 = vld [vmem:[%s232 + $0x58] sm:$0xff]
        %v245 = vld [vmem:[%s232 + $0x60] sm:$0xff]
        %v246 = vld [vmem:[%s232 + $0x68] sm:$0xff]
        %v247 = vld [vmem:[%s232 + $0x70] sm:$0xff]
        %v248 = vld [vmem:[%s232 + $0x78] sm:$0xff]
        %v249 = vld [vmem:[%s232 + $0x80] sm:$0xff]
        %v250 = vld [vmem:[%s232 + $0x88] sm:$0xff]
        %v251 = vld [vmem:[%s232 + $0x90] sm:$0xff]
        %v252 = vld [vmem:[%s232 + $0x98] sm:$0xff]
        %v253 = vld [vmem:[%s232 + $0xa0] sm:$0xff]
        %v254 = vld [vmem:[%s232 + $0xa8] sm:$0xff]
        %v255 = vld [vmem:[%s232 + $0xb0] sm:$0xff]
        %v256 = vld [vmem:[%s232 + $0xb8] sm:$0xff]
        %v257 = vld [vmem:[%s232 + $0xc0] sm:$0xff]
        %v258 = vld [vmem:[%s232 + $0xc8] sm:$0xff]
        %v259 = vld [vmem:[%s232 + $0xd0] sm:$0xff]
        %v260 = vld [vmem:[%s232 + $0xd8] sm:$0xff]
        %v261 = vld [vmem:[%s232 + $0xe0] sm:$0xff]
        %v262 = vld [vmem:[%s232 + $0xe8] sm:$0xff]
        %v263 = vld [vmem:[%s232 + $0xf0] sm:$0xff]
        %v264 = vld [vmem:[%s232 + $0xf8] sm:$0xff]
        %v297 = vunpack.c.l.b16 %v233
        %v298 = vunpack.c.h.b16 %v233
        %v299 = vunpack.c.l.b16 %v234
        %v300 = vunpack.c.h.b16 %v234
        %v301 = vunpack.c.l.b16 %v235
        %v302 = vunpack.c.h.b16 %v235
        %v303 = vunpack.c.l.b16 %v236
        %v304 = vunpack.c.h.b16 %v236
        %v305 = vunpack.c.l.b16 %v237
        %v306 = vunpack.c.h.b16 %v237
        %v307 = vunpack.c.l.b16 %v238
        %v308 = vunpack.c.h.b16 %v238
        %v309 = vunpack.c.l.b16 %v239
        %v310 = vunpack.c.h.b16 %v239
        %v311 = vunpack.c.l.b16 %v240
        %v312 = vunpack.c.h.b16 %v240
        %v313 = vunpack.c.l.b16 %v241
        %v314 = vunpack.c.h.b16 %v241
        %v315 = vunpack.c.l.b16 %v242
        %v316 = vunpack.c.h.b16 %v242
        %v317 = vunpack.c.l.b16 %v243
        %v318 = vunpack.c.h.b16 %v243
        %v319 = vunpack.c.l.b16 %v244
        %v320 = vunpack.c.h.b16 %v244
        %v321 = vunpack.c.l.b16 %v245
        %v322 = vunpack.c.h.b16 %v245
        %v323 = vunpack.c.l.b16 %v246
        %v324 = vunpack.c.h.b16 %v246
        %v325 = vunpack.c.l.b16 %v247
        %v326 = vunpack.c.h.b16 %v247
        %v327 = vunpack.c.l.b16 %v248
        %v328 = vunpack.c.h.b16 %v248
        %v329 = vunpack.c.l.b16 %v249
        %v330 = vunpack.c.h.b16 %v249
        %v331 = vunpack.c.l.b16 %v250
        %v332 = vunpack.c.h.b16 %v250
        %v333 = vunpack.c.l.b16 %v251
        %v334 = vunpack.c.h.b16 %v251
        %v335 = vunpack.c.l.b16 %v252
        %v336 = vunpack.c.h.b16 %v252
        %v337 = vunpack.c.l.b16 %v253
        %v338 = vunpack.c.h.b16 %v253
        %v339 = vunpack.c.l.b16 %v254
        %v340 = vunpack.c.h.b16 %v254
        %v341 = vunpack.c.l.b16 %v255
        %v342 = vunpack.c.h.b16 %v255
        %v343 = vunpack.c.l.b16 %v256
        %v344 = vunpack.c.h.b16 %v256
        %v345 = vunpack.c.l.b16 %v257
        %v346 = vunpack.c.h.b16 %v257
        %v347 = vunpack.c.l.b16 %v258
        %v348 = vunpack.c.h.b16 %v258
        %v349 = vunpack.c.l.b16 %v259
        %v350 = vunpack.c.h.b16 %v259
        %v351 = vunpack.c.l.b16 %v260
        %v352 = vunpack.c.h.b16 %v260
        %v353 = vunpack.c.l.b16 %v261
        %v354 = vunpack.c.h.b16 %v261
        %v355 = vunpack.c.l.b16 %v262
        %v356 = vunpack.c.h.b16 %v262
        %v357 = vunpack.c.l.b16 %v263
        %v358 = vunpack.c.h.b16 %v263
        %v359 = vunpack.c.l.b16 %v264
        %v360 = vunpack.c.h.b16 %v264
        %v361 = vpack.c.b16 %v299, %v297
        %v362 = vpack.c.b16 %v300, %v298
        %v363 = vpack.c.b16 %v303, %v301
        %v364 = vpack.c.b16 %v304, %v302
        %v365 = vpack.c.b16 %v307, %v305
        %v366 = vpack.c.b16 %v308, %v306
        %v367 = vpack.c.b16 %v311, %v309
        %v368 = vpack.c.b16 %v312, %v310
        %v369 = vpack.c.b16 %v315, %v313
        %v370 = vpack.c.b16 %v316, %v314
        %v371 = vpack.c.b16 %v319, %v317
        %v372 = vpack.c.b16 %v320, %v318
        %v373 = vpack.c.b16 %v323, %v321
        %v374 = vpack.c.b16 %v324, %v322
        %v375 = vpack.c.b16 %v327, %v325
        %v376 = vpack.c.b16 %v328, %v326
        %v377 = vpack.c.b16 %v331, %v329
        %v378 = vpack.c.b16 %v332, %v330
        %v379 = vpack.c.b16 %v335, %v333
        %v380 = vpack.c.b16 %v336, %v334
        %v381 = vpack.c.b16 %v339, %v337
        %v382 = vpack.c.b16 %v340, %v338
        %v383 = vpack.c.b16 %v343, %v341
        %v384 = vpack.c.b16 %v344, %v342
        %v385 = vpack.c.b16 %v347, %v345
        %v386 = vpack.c.b16 %v348, %v346
        %v387 = vpack.c.b16 %v351, %v349
        %v388 = vpack.c.b16 %v352, %v350
        %v389 = vpack.c.b16 %v355, %v353
        %v390 = vpack.c.b16 %v356, %v354
        %v391 = vpack.c.b16 %v359, %v357
        %v392 = vpack.c.b16 %v360, %v358
        %425 = vmatprep.subr.bf16.mxu0 %v376
        %426 = vmatpush1.bf16.msra.mxu0 %v375
        %427 = vmatprep.subr.bf16.mxu0 %v374
        %428 = vmatpush1.bf16.msra.mxu0 %v373
        %429 = vmatprep.subr.bf16.mxu0 %v372
        %430 = vmatpush1.bf16.msra.mxu0 %v371
        %431 = vmatprep.subr.bf16.mxu0 %v370
        %432 = vmatpush1.bf16.msra.mxu0 %v369
        %433 = vmatprep.subr.bf16.mxu0 %v368
        %434 = vmatpush1.bf16.msra.mxu0 %v367
        %435 = vmatprep.subr.bf16.mxu0 %v366
        %436 = vmatpush1.bf16.msra.mxu0 %v365
        %437 = vmatprep.subr.bf16.mxu0 %v364
        %438 = vmatpush1.bf16.msra.mxu0 %v363
        %439 = vmatprep.subr.bf16.mxu0 %v362
        %440 = vmatpush1.bf16.msra.mxu0 %v361
        %441 = vmatprep.subr.bf16.mxu0 %v392
        %442 = vmatpush2.bf16.msra.mxu0 %v391
        %443 = vmatprep.subr.bf16.mxu0 %v390
        %444 = vmatpush2.bf16.msra.mxu0 %v389
        %445 = vmatprep.subr.bf16.mxu0 %v388
        %446 = vmatpush2.bf16.msra.mxu0 %v387
        %447 = vmatprep.subr.bf16.mxu0 %v386
        %448 = vmatpush2.bf16.msra.mxu0 %v385
        %449 = vmatprep.subr.bf16.mxu0 %v384
        %450 = vmatpush2.bf16.msra.mxu0 %v383
        %451 = vmatprep.subr.bf16.mxu0 %v382
        %452 = vmatpush2.bf16.msra.mxu0 %v381
        %453 = vmatprep.subr.bf16.mxu0 %v380
        %454 = vmatpush2.bf16.msra.mxu0 %v379
        %455 = vmatprep.subr.bf16.mxu0 %v378
        %456 = vmatpush2.bf16.msra.mxu0 %v377
        %457 = vmatprep.mubr.bf16.mxu0 %v231
        %458 = vmatmul.mubr.bf16.gmra.mxu0 %v230
        %v459 = vpop.f32.mrf.mxu0
        %v460 = vadd.f32 0.0, %v459
        %v461 = vpop.f32.mrf.mxu0
        %v462 = vadd.f32 0.0, %v461
        %v463 = vpop.f32.mrf.mxu0
        %v464 = vpop.f32.mrf.mxu0
        %465 = vdwg.mxu0
        %v498 = vunpack.c.l.b16 %v191
        %v499 = vunpack.c.h.b16 %v191
        %v500 = vunpack.c.l.b16 %v192
        %v501 = vunpack.c.h.b16 %v192
        %v502 = vunpack.c.l.b16 %v193
        %v503 = vunpack.c.h.b16 %v193
        %v504 = vunpack.c.l.b16 %v194
        %v505 = vunpack.c.h.b16 %v194
        %v506 = vunpack.c.l.b16 %v195
        %v507 = vunpack.c.h.b16 %v195
        %v508 = vunpack.c.l.b16 %v196
        %v509 = vunpack.c.h.b16 %v196
        %v510 = vunpack.c.l.b16 %v197
        %v511 = vunpack.c.h.b16 %v197
        %v512 = vunpack.c.l.b16 %v198
        %v513 = vunpack.c.h.b16 %v198
        %v514 = vunpack.c.l.b16 %v199
        %v515 = vunpack.c.h.b16 %v199
        %v516 = vunpack.c.l.b16 %v200
        %v517 = vunpack.c.h.b16 %v200
        %v518 = vunpack.c.l.b16 %v201
        %v519 = vunpack.c.h.b16 %v201
        %v520 = vunpack.c.l.b16 %v202
        %v521 = vunpack.c.h.b16 %v202
        %v522 = vunpack.c.l.b16 %v203
        %v523 = vunpack.c.h.b16 %v203
        %v524 = vunpack.c.l.b16 %v204
        %v525 = vunpack.c.h.b16 %v204
        %v526 = vunpack.c.l.b16 %v205
        %v527 = vunpack.c.h.b16 %v205
        %v528 = vunpack.c.l.b16 %v206
        %v529 = vunpack.c.h.b16 %v206
        %v530 = vunpack.c.l.b16 %v207
        %v531 = vunpack.c.h.b16 %v207
        %v532 = vunpack.c.l.b16 %v208
        %v533 = vunpack.c.h.b16 %v208
        %v534 = vunpack.c.l.b16 %v209
        %v535 = vunpack.c.h.b16 %v209
        %v536 = vunpack.c.l.b16 %v210
        %v537 = vunpack.c.h.b16 %v210
        %v538 = vunpack.c.l.b16 %v211
        %v539 = vunpack.c.h.b16 %v211
        %v540 = vunpack.c.l.b16 %v212
        %v541 = vunpack.c.h.b16 %v212
        %v542 = vunpack.c.l.b16 %v213
        %v543 = vunpack.c.h.b16 %v213
        %v544 = vunpack.c.l.b16 %v214
        %v545 = vunpack.c.h.b16 %v214
        %v546 = vunpack.c.l.b16 %v215
        %v547 = vunpack.c.h.b16 %v215
        %v548 = vunpack.c.l.b16 %v216
        %v549 = vunpack.c.h.b16 %v216
        %v550 = vunpack.c.l.b16 %v217
        %v551 = vunpack.c.h.b16 %v217
        %v552 = vunpack.c.l.b16 %v218
        %v553 = vunpack.c.h.b16 %v218
        %v554 = vunpack.c.l.b16 %v219
        %v555 = vunpack.c.h.b16 %v219
        %v556 = vunpack.c.l.b16 %v220
        %v557 = vunpack.c.h.b16 %v220
        %v558 = vunpack.c.l.b16 %v221
        %v559 = vunpack.c.h.b16 %v221
        %v560 = vunpack.c.l.b16 %v222
        %v561 = vunpack.c.h.b16 %v222
        %v562 = vpack.c.b16 %v500, %v498
        %v563 = vpack.c.b16 %v501, %v499
        %v564 = vpack.c.b16 %v504, %v502
        %v565 = vpack.c.b16 %v505, %v503
        %v566 = vpack.c.b16 %v508, %v506
        %v567 = vpack.c.b16 %v509, %v507
        %v568 = vpack.c.b16 %v512, %v510
        %v569 = vpack.c.b16 %v513, %v511
        %v570 = vpack.c.b16 %v516, %v514
        %v571 = vpack.c.b16 %v517, %v515
        %v572 = vpack.c.b16 %v520, %v518
        %v573 = vpack.c.b16 %v521, %v519
        %v574 = vpack.c.b16 %v524, %v522
        %v575 = vpack.c.b16 %v525, %v523
        %v576 = vpack.c.b16 %v528, %v526
        %v577 = vpack.c.b16 %v529, %v527
        %v578 = vpack.c.b16 %v532, %v530
        %v579 = vpack.c.b16 %v533, %v531
        %v580 = vpack.c.b16 %v536, %v534
        %v581 = vpack.c.b16 %v537, %v535
        %v582 = vpack.c.b16 %v540, %v538
        %v583 = vpack.c.b16 %v541, %v539
        %v584 = vpack.c.b16 %v544, %v542
        %v585 = vpack.c.b16 %v545, %v543
        %v586 = vpack.c.b16 %v548, %v546
        %v587 = vpack.c.b16 %v549, %v547
        %v588 = vpack.c.b16 %v552, %v550
        %v589 = vpack.c.b16 %v553, %v551
        %v590 = vpack.c.b16 %v556, %v554
        %v591 = vpack.c.b16 %v557, %v555
        %v592 = vpack.c.b16 %v560, %v558
        %v593 = vpack.c.b16 %v561, %v559
        %626 = vmatprep.subr.bf16.mxu0 %v577
        %627 = vmatpush1.bf16.msra.mxu0 %v576
        %628 = vmatprep.subr.bf16.mxu0 %v575
        %629 = vmatpush1.bf16.msra.mxu0 %v574
        %630 = vmatprep.subr.bf16.mxu0 %v573
        %631 = vmatpush1.bf16.msra.mxu0 %v572
        %632 = vmatprep.subr.bf16.mxu0 %v571
        %633 = vmatpush1.bf16.msra.mxu0 %v570
        %634 = vmatprep.subr.bf16.mxu0 %v569
        %635 = vmatpush1.bf16.msra.mxu0 %v568
        %636 = vmatprep.subr.bf16.mxu0 %v567
        %637 = vmatpush1.bf16.msra.mxu0 %v566
        %638 = vmatprep.subr.bf16.mxu0 %v565
        %639 = vmatpush1.bf16.msra.mxu0 %v564
        %640 = vmatprep.subr.bf16.mxu0 %v563
        %641 = vmatpush1.bf16.msra.mxu0 %v562
        %642 = vmatprep.subr.bf16.mxu0 %v593
        %643 = vmatpush2.bf16.msra.mxu0 %v592
        %644 = vmatprep.subr.bf16.mxu0 %v591
        %645 = vmatpush2.bf16.msra.mxu0 %v590
        %646 = vmatprep.subr.bf16.mxu0 %v589
        %647 = vmatpush2.bf16.msra.mxu0 %v588
        %648 = vmatprep.subr.bf16.mxu0 %v587
        %649 = vmatpush2.bf16.msra.mxu0 %v586
        %650 = vmatprep.subr.bf16.mxu0 %v585
        %651 = vmatpush2.bf16.msra.mxu0 %v584
        %652 = vmatprep.subr.bf16.mxu0 %v583
        %653 = vmatpush2.bf16.msra.mxu0 %v582
        %654 = vmatprep.subr.bf16.mxu0 %v581
        %655 = vmatpush2.bf16.msra.mxu0 %v580
        %656 = vmatprep.subr.bf16.mxu0 %v579
        %657 = vmatpush2.bf16.msra.mxu0 %v578
        %658 = vmatprep.mubr.bf16.mxu0 %v190
        %659 = vmatmul.mubr.bf16.gmra.mxu0 %v189
        %v660 = vpop.f32.mrf.mxu0
        %v661 = vadd.f32 %v460, %v660
        %v662 = vpop.f32.mrf.mxu0
        %v663 = vadd.f32 %v462, %v662
        %v664 = vpop.f32.mrf.mxu0
        %v665 = vpop.f32.mrf.mxu0
        %666 = vdwg.mxu0
        %s667 = sadd.s32 %s182, 2
        %s668 = sld [smem:[#allocation3 + %s667]]
        %s669 = smul.u32 %s668, 2
        %s670 = smul.addr %s669, 8
        %s671 = scalar_lea.vmem [#allocation4], %s670
        %v672 = vld [vmem:[%s671] sm:$0xff]
        %v673 = vld [vmem:[%s671 + $0x8] sm:$0xff]
        %v674 = vpack.c.bf16 %v672, %v672
        %v675 = vpack.c.bf16 %v673, %v673
        %s676 = scalar_lea.vmem %s161, 512 [#allocation7]
        %v677 = vld [vmem:[%s676] sm:$0xff]
        %v678 = vld [vmem:[%s676 + $0x8] sm:$0xff]
        %v679 = vld [vmem:[%s676 + $0x10] sm:$0xff]
        %v680 = vld [vmem:[%s676 + $0x18] sm:$0xff]
        %v681 = vld [vmem:[%s676 + $0x20] sm:$0xff]
        %v682 = vld [vmem:[%s676 + $0x28] sm:$0xff]
        %v683 = vld [vmem:[%s676 + $0x30] sm:$0xff]
        %v684 = vld [vmem:[%s676 + $0x38] sm:$0xff]
        %v685 = vld [vmem:[%s676 + $0x40] sm:$0xff]
        %v686 = vld [vmem:[%s676 + $0x48] sm:$0xff]
        %v687 = vld [vmem:[%s676 + $0x50] sm:$0xff]
        %v688 = vld [vmem:[%s676 + $0x58] sm:$0xff]
        %v689 = vld [vmem:[%s676 + $0x60] sm:$0xff]
        %v690 = vld [vmem:[%s676 + $0x68] sm:$0xff]
        %v691 = vld [vmem:[%s676 + $0x70] sm:$0xff]
        %v692 = vld [vmem:[%s676 + $0x78] sm:$0xff]
        %v693 = vld [vmem:[%s676 + $0x80] sm:$0xff]
        %v694 = vld [vmem:[%s676 + $0x88] sm:$0xff]
        %v695 = vld [vmem:[%s676 + $0x90] sm:$0xff]
        %v696 = vld [vmem:[%s676 + $0x98] sm:$0xff]
        %v697 = vld [vmem:[%s676 + $0xa0] sm:$0xff]
        %v698 = vld [vmem:[%s676 + $0xa8] sm:$0xff]
        %v699 = vld [vmem:[%s676 + $0xb0] sm:$0xff]
        %v700 = vld [vmem:[%s676 + $0xb8] sm:$0xff]
        %v701 = vld [vmem:[%s676 + $0xc0] sm:$0xff]
        %v702 = vld [vmem:[%s676 + $0xc8] sm:$0xff]
        %v703 = vld [vmem:[%s676 + $0xd0] sm:$0xff]
        %v704 = vld [vmem:[%s676 + $0xd8] sm:$0xff]
        %v705 = vld [vmem:[%s676 + $0xe0] sm:$0xff]
        %v706 = vld [vmem:[%s676 + $0xe8] sm:$0xff]
        %v707 = vld [vmem:[%s676 + $0xf0] sm:$0xff]
        %v708 = vld [vmem:[%s676 + $0xf8] sm:$0xff]
        %v741 = vunpack.c.l.b16 %v677
        %v742 = vunpack.c.h.b16 %v677
        %v743 = vunpack.c.l.b16 %v678
        %v744 = vunpack.c.h.b16 %v678
        %v745 = vunpack.c.l.b16 %v679
        %v746 = vunpack.c.h.b16 %v679
        %v747 = vunpack.c.l.b16 %v680
        %v748 = vunpack.c.h.b16 %v680
        %v749 = vunpack.c.l.b16 %v681
        %v750 = vunpack.c.h.b16 %v681
        %v751 = vunpack.c.l.b16 %v682
        %v752 = vunpack.c.h.b16 %v682
        %v753 = vunpack.c.l.b16 %v683
        %v754 = vunpack.c.h.b16 %v683
        %v755 = vunpack.c.l.b16 %v684
        %v756 = vunpack.c.h.b16 %v684
        %v757 = vunpack.c.l.b16 %v685
        %v758 = vunpack.c.h.b16 %v685
        %v759 = vunpack.c.l.b16 %v686
        %v760 = vunpack.c.h.b16 %v686
        %v761 = vunpack.c.l.b16 %v687
        %v762 = vunpack.c.h.b16 %v687
        %v763 = vunpack.c.l.b16 %v688
        %v764 = vunpack.c.h.b16 %v688
        %v765 = vunpack.c.l.b16 %v689
        %v766 = vunpack.c.h.b16 %v689
        %v767 = vunpack.c.l.b16 %v690
        %v768 = vunpack.c.h.b16 %v690
        %v769 = vunpack.c.l.b16 %v691
        %v770 = vunpack.c.h.b16 %v691
        %v771 = vunpack.c.l.b16 %v692
        %v772 = vunpack.c.h.b16 %v692
        %v773 = vunpack.c.l.b16 %v693
        %v774 = vunpack.c.h.b16 %v693
        %v775 = vunpack.c.l.b16 %v694
        %v776 = vunpack.c.h.b16 %v694
        %v777 = vunpack.c.l.b16 %v695
        %v778 = vunpack.c.h.b16 %v695
        %v779 = vunpack.c.l.b16 %v696
        %v780 = vunpack.c.h.b16 %v696
        %v781 = vunpack.c.l.b16 %v697
        %v782 = vunpack.c.h.b16 %v697
        %v783 = vunpack.c.l.b16 %v698
        %v784 = vunpack.c.h.b16 %v698
        %v785 = vunpack.c.l.b16 %v699
        %v786 = vunpack.c.h.b16 %v699
        %v787 = vunpack.c.l.b16 %v700
        %v788 = vunpack.c.h.b16 %v700
        %v789 = vunpack.c.l.b16 %v701
        %v790 = vunpack.c.h.b16 %v701
        %v791 = vunpack.c.l.b16 %v702
        %v792 = vunpack.c.h.b16 %v702
        %v793 = vunpack.c.l.b16 %v703
        %v794 = vunpack.c.h.b16 %v703
        %v795 = vunpack.c.l.b16 %v704
        %v796 = vunpack.c.h.b16 %v704
        %v797 = vunpack.c.l.b16 %v705
        %v798 = vunpack.c.h.b16 %v705
        %v799 = vunpack.c.l.b16 %v706
        %v800 = vunpack.c.h.b16 %v706
        %v801 = vunpack.c.l.b16 %v707
        %v802 = vunpack.c.h.b16 %v707
        %v803 = vunpack.c.l.b16 %v708
        %v804 = vunpack.c.h.b16 %v708
        %v805 = vpack.c.b16 %v743, %v741
        %v806 = vpack.c.b16 %v744, %v742
        %v807 = vpack.c.b16 %v747, %v745
        %v808 = vpack.c.b16 %v748, %v746
        %v809 = vpack.c.b16 %v751, %v749
        %v810 = vpack.c.b16 %v752, %v750
        %v811 = vpack.c.b16 %v755, %v753
        %v812 = vpack.c.b16 %v756, %v754
        %v813 = vpack.c.b16 %v759, %v757
        %v814 = vpack.c.b16 %v760, %v758
        %v815 = vpack.c.b16 %v763, %v761
        %v816 = vpack.c.b16 %v764, %v762
        %v817 = vpack.c.b16 %v767, %v765
        %v818 = vpack.c.b16 %v768, %v766
        %v819 = vpack.c.b16 %v771, %v769
        %v820 = vpack.c.b16 %v772, %v770
        %v821 = vpack.c.b16 %v775, %v773
        %v822 = vpack.c.b16 %v776, %v774
        %v823 = vpack.c.b16 %v779, %v777
        %v824 = vpack.c.b16 %v780, %v778
        %v825 = vpack.c.b16 %v783, %v781
        %v826 = vpack.c.b16 %v784, %v782
        %v827 = vpack.c.b16 %v787, %v785
        %v828 = vpack.c.b16 %v788, %v786
        %v829 = vpack.c.b16 %v791, %v789
        %v830 = vpack.c.b16 %v792, %v790
        %v831 = vpack.c.b16 %v795, %v793
        %v832 = vpack.c.b16 %v796, %v794
        %v833 = vpack.c.b16 %v799, %v797
        %v834 = vpack.c.b16 %v800, %v798
        %v835 = vpack.c.b16 %v803, %v801
        %v836 = vpack.c.b16 %v804, %v802
        %869 = vmatprep.subr.bf16.mxu0 %v820
        %870 = vmatpush1.bf16.msra.mxu0 %v819
        %871 = vmatprep.subr.bf16.mxu0 %v818
        %872 = vmatpush1.bf16.msra.mxu0 %v817
        %873 = vmatprep.subr.bf16.mxu0 %v816
        %874 = vmatpush1.bf16.msra.mxu0 %v815
        %875 = vmatprep.subr.bf16.mxu0 %v814
        %876 = vmatpush1.bf16.msra.mxu0 %v813
        %877 = vmatprep.subr.bf16.mxu0 %v812
        %878 = vmatpush1.bf16.msra.mxu0 %v811
        %879 = vmatprep.subr.bf16.mxu0 %v810
        %880 = vmatpush1.bf16.msra.mxu0 %v809
        %881 = vmatprep.subr.bf16.mxu0 %v808
        %882 = vmatpush1.bf16.msra.mxu0 %v807
        %883 = vmatprep.subr.bf16.mxu0 %v806
        %884 = vmatpush1.bf16.msra.mxu0 %v805
        %885 = vmatprep.subr.bf16.mxu0 %v836
        %886 = vmatpush2.bf16.msra.mxu0 %v835
        %887 = vmatprep.subr.bf16.mxu0 %v834
        %888 = vmatpush2.bf16.msra.mxu0 %v833
        %889 = vmatprep.subr.bf16.mxu0 %v832
        %890 = vmatpush2.bf16.msra.mxu0 %v831
        %891 = vmatprep.subr.bf16.mxu0 %v830
        %892 = vmatpush2.bf16.msra.mxu0 %v829
        %893 = vmatprep.subr.bf16.mxu0 %v828
        %894 = vmatpush2.bf16.msra.mxu0 %v827
        %895 = vmatprep.subr.bf16.mxu0 %v826
        %896 = vmatpush2.bf16.msra.mxu0 %v825
        %897 = vmatprep.subr.bf16.mxu0 %v824
        %898 = vmatpush2.bf16.msra.mxu0 %v823
        %899 = vmatprep.subr.bf16.mxu0 %v822
        %900 = vmatpush2.bf16.msra.mxu0 %v821
        %901 = vmatprep.mubr.bf16.mxu0 %v675
        %902 = vmatmul.mubr.bf16.gmra.mxu0 %v674
        %v903 = vpop.f32.mrf.mxu0
        %v904 = vadd.f32 0.0, %v903
        %v905 = vpop.f32.mrf.mxu0
        %v906 = vadd.f32 0.0, %v905
        %v907 = vpop.f32.mrf.mxu0
        %v908 = vpop.f32.mrf.mxu0
        %909 = vdwg.mxu0
        %v910 = vadd.f32 %v661, %v904
        %v911 = vadd.f32 %v663, %v906
        %v912 = vmul.f32 %v910, 0.33333334
        %v913 = vmul.f32 %v911, 0.33333334
        %914 = vst [vmem:[%s181] sm:$0xff] %v912
        %915 = vst [vmem:[%s181 + $0x8] sm:$0xff] %v913
        %s916 = sand.u32 %s80, 1
        %s917 = scalar_lea.sflag [#allocation6], %s916
        %s918 = sand.u32 %s80, 1
        %s919 = smul.addr %s918, 16
        %s920 = scalar_lea.vmem [#allocation9], %s919
        // Predicated region
        $region37: #{tpu_custom_call.1} parent=27 // pred_check
          %p921 = pneg %p90
        $region38: #{tpu_custom_call.1} parent=27 // pred_check_branch
          %923 = sbr.rel (%p921) target = $region40
        $region39: #{tpu_custom_call.1} parent=27 // pred_region
          %s925 = ssub.s32 256, 256
          %926 = vsyncadd %s917, %s925
          %s927 = smul.addr %s25, 2
          %s928 = smul.addr %s927, 128
          %s929 = scalar_lea.hbm %s3, %s928
          %s931 = sshll.u32 %s920, 4
          %s932 = int_to_ptr.vmem [resolvable:$true] %s931
          %934 = dma.vmem_to_hbm [thread:$0]  %s932, 256, %s929, %s917
        $region40: #{tpu_custom_call.1} parent=27 // pred_fallthru
          _
      $region28: #{tpu_custom_call.1} parent=5 // pred_fallthru
        _
      %p935 = scmp.le.s32.totalorder 2, %s20
      // Predicated region
      $region41: #{tpu_custom_call.1} parent=5 // pred_check
        %p936 = pneg %p935
      $region42: #{tpu_custom_call.1} parent=5 // pred_check_branch
        %938 = sbr.rel (%p936) target = $region44
      $region43: #{tpu_custom_call.1} parent=5 // pred_region
        %s939 = ssub.s32 %s20, 2
        // Predicated region
        $region45: #{tpu_custom_call.1} parent=43 // pred_check
          %p940 = pneg %p96
        $region46: #{tpu_custom_call.1} parent=43 // pred_check_branch
          %942 = sbr.rel (%p940) target = $region48
        $region47: #{tpu_custom_call.1} parent=43 // pred_region
          %s943 = sand.u32 %s81, 1
          %s944 = scalar_lea.sflag [#allocation6], %s943
          %s945 = sand.u32 %s81, 1
          %s946 = smul.addr %s945, 16
          %s947 = scalar_lea.vmem [#allocation9], %s946
          %948 = dma.done %s944, 256
        $region48: #{tpu_custom_call.1} parent=43 // pred_fallthru
          _
      $region44: #{tpu_custom_call.1} parent=5 // pred_fallthru
        _
    $region6: #{tpu_custom_call.1} parent=1 // loop_footer
      %s24 = sadd.s32 1, %s20
    $region7: #{tpu_custom_call.1} parent=1 // loop_footer_branch
      %19 = sbr.rel target = $region3
    $region8: #{tpu_custom_call.1} parent=1 // loop_exit
      _
    %949 = vsyncpa [#allocation5], 1
    %s950 = scalar_lea.sflag [#allocation5], 1
    %951 = vsyncpa %s950, 1
    %952 = vsyncpa [#allocation8], 1
    %s953 = scalar_lea.sflag [#allocation8], 1
    %954 = vsyncpa %s953, 1
    %955 = vsyncpa [#allocation6], 1
    %s956 = scalar_lea.sflag [#allocation6], 1
    %957 = vsyncpa %s956, 1

</llo_original>
